<compile_context>
chip_gen: v7x
topology: tpu7x:2x2x1
jax: 0.10.0
libtpu: 0.0.40
codegen_flags: <defaults>
</compile_context>

<pallas_src>
import numpy as np
import jax
import jax.numpy as jnp
from jax.experimental import pallas as pl
from jax.experimental.pallas import tpu as pltpu

POOL_SIZES = (1, 2, 3, 6)
KK_LIST = tuple(k * k for k in POOL_SIZES)            # (1, 4, 9, 36)
KK_OFFS = tuple(np.cumsum((0,) + KK_LIST).tolist())   # (0, 1, 5, 14, 50)
KKPAD = 128                                           # lane-dense pooled axis


# ---------------------------------------------------------------------------
# Glue: fixed linear operators for adaptive-avg-pool / bilinear upsample.
# ---------------------------------------------------------------------------
def adaptive_avg_pool_matrix(k, n):
    """P[k, n]: row i averages input indices [floor(i*n/k), ceil((i+1)*n/k))."""
    P = np.zeros((k, n), np.float32)
    for i in range(k):
        start = (i * n) // k
        end = -((-(i + 1) * n) // k)  # ceil((i+1)*n/k)
        P[i, start:end] = 1.0 / (end - start)
    return P


def bilinear_upsample_matrix(n_out, n_in):
    """U[n_out, n_in]: bilinear interpolation, align_corners=False (PyTorch)."""
    U = np.zeros((n_out, n_in), np.float32)
    scale = n_in / n_out
    for o in range(n_out):
        src = max((o + 0.5) * scale - 0.5, 0.0)
        i0 = min(int(np.floor(src)), n_in - 1)
        i1 = min(i0 + 1, n_in - 1)
        w1 = src - float(i0)
        U[o, i0] += 1.0 - w1
        U[o, i1] += w1
    return U


# ---------------------------------------------------------------------------
# Pallas kernel: whole batch + all 4 branches in one invocation.
# ---------------------------------------------------------------------------
def pyramid_kernel(x_ref, w_ref, pf_ref, sh_ref, mk_ref, uf_ref, out_ref):
    # x_ref:  (C, B*HW)        input, batch folded into lanes
    # w_ref:  (4*OC, C)        BN-scale-folded 1x1 conv weights, all branches
    # pf_ref: (B*HW, B*KKPAD)  block-diagonal pooling operator (padded to 128)
    # sh_ref: (4*OC, B*KKPAD)  BN shift slab (per-row shift, host-broadcast)
    # mk_ref: (4*OC, B*KKPAD)  branch block mask (1 on own-branch columns)
    # uf_ref: (B*KKPAD, B*HW)  block-diagonal bilinear-upsample operator
    # out_ref:(C + 4*OC, B*HW)
    C = x_ref.shape[0]
    x2 = x_ref[...]
    out_ref[:C, :] = x2                                                     # pass-through rows

    y = jnp.dot(w_ref[...], x2, preferred_element_type=jnp.float32)        # (4OC, B*HW)  conv
    pooled = jnp.dot(y, pf_ref[...], preferred_element_type=jnp.float32)   # (4OC, B*KKPAD) pool
    z = jnp.maximum(pooled + sh_ref[...], 0.0) * mk_ref[...]               # BN shift + ReLU + mask
    feats = jnp.dot(z, uf_ref[...], preferred_element_type=jnp.float32)    # (4OC, B*HW)  upsample
    out_ref[C:, :] = feats                                                  # one contiguous store


# ---------------------------------------------------------------------------
# Wrapper
# ---------------------------------------------------------------------------
def pyramid_pooling(x, w_stack, sc_stack, sh_stack):
    B, C, H, W = x.shape
    OC = w_stack.shape[1]
    C4 = 4 * OC
    HW = H * W
    assert HW % 128 == 0, "spatial axis must be lane-aligned (pad HW otherwise)"
    assert KK_OFFS[-1] <= KKPAD

    # ---- fixed operators (host glue) ----
    Pcat = np.zeros((HW, KKPAD), np.float32)
    Ucat = np.zeros((KKPAD, HW), np.float32)
    for br, k in enumerate(POOL_SIZES):
        lo, hi = KK_OFFS[br], KK_OFFS[br + 1]
        Ph = adaptive_avg_pool_matrix(k, H)
        Pw = adaptive_avg_pool_matrix(k, W)
        Pcat[:, lo:hi] = np.kron(Ph, Pw).T            # (HW, kk)
        Uh = bilinear_upsample_matrix(H, k)
        Uw = bilinear_upsample_matrix(W, k)
        Ucat[lo:hi, :] = np.kron(Uh, Uw).T            # (kk, HW)
    eye_b = np.eye(B, dtype=np.float32)
    P_full = np.kron(eye_b, Pcat)                     # (B*HW, B*KKPAD)
    U_full = np.kron(eye_b, Ucat)                     # (B*KKPAD, B*HW)

    # Branch block mask: output row-block br only keeps its own kk columns.
    mask1 = np.zeros((C4, KKPAD), np.float32)
    for br in range(4):
        mask1[br * OC:(br + 1) * OC, KK_OFFS[br]:KK_OFFS[br + 1]] = 1.0
    mask = np.tile(mask1, (1, B))                     # (C4, B*KKPAD)

    # BN scale folded into conv weights; shift kept as an additive slab.
    w_all = (np.asarray(sc_stack) * np.asarray(w_stack)).reshape(C4, C)
    shift_full = np.ascontiguousarray(
        np.broadcast_to(np.asarray(sh_stack).reshape(C4, 1),
                        (C4, B * KKPAD))).astype(np.float32)

    # Batch folded into lanes: (B,C,H,W) -> (C, B*HW).
    x_all = jnp.transpose(x, (1, 0, 2, 3)).reshape(C, B * HW)

    out_c = C + C4
    # NOTE: grid=(1,) -> every operand is DMA'd exactly once; single-buffering
    # the tables (pl.Buffered(1)) would only shave a little VMEM and is skipped.
    out2 = pl.pallas_call(
        pyramid_kernel,
        out_shape=jax.ShapeDtypeStruct((out_c, B * HW), jnp.float32),
        grid=(1,),
        in_specs=[
            pl.BlockSpec((C, B * HW), lambda i: (0, 0)),
            pl.BlockSpec((C4, C), lambda i: (0, 0)),
            pl.BlockSpec((B * HW, B * KKPAD), lambda i: (0, 0)),
            pl.BlockSpec((C4, B * KKPAD), lambda i: (0, 0)),
            pl.BlockSpec((C4, B * KKPAD), lambda i: (0, 0)),
            pl.BlockSpec((B * KKPAD, B * HW), lambda i: (0, 0)),
        ],
        out_specs=pl.BlockSpec((out_c, B * HW), lambda i: (0, 0)),
        compiler_params=pltpu.CompilerParams(dimension_semantics=("arbitrary",)),
    )(x_all, jnp.asarray(w_all), jnp.asarray(P_full), jnp.asarray(shift_full),
      jnp.asarray(mask), jnp.asarray(U_full))

    # (C+4*OC, B*HW) -> (B, C+4*OC, H, W)   (host glue)
    return jnp.transpose(out2.reshape(out_c, B, H, W), (1, 0, 2, 3))


# ---------------------------------------------------------------------------
# Pure-JAX reference in the original per-branch order (pool -> conv -> BN ->
# ReLU -> upsample), to validate the fused/commuted kernel math.
# ---------------------------------------------------------------------------
def reference(x, w_stack, sc_stack, sh_stack):
    B, C, H, W = x.shape
    x2 = x.reshape(B, C, H * W)
    feats = [x2]
    for br, k in enumerate(POOL_SIZES):
        P = jnp.asarray(np.kron(adaptive_avg_pool_matrix(k, H),
                                adaptive_avg_pool_matrix(k, W)))    # (kk, HW)
        U = jnp.asarray(np.kron(bilinear_upsample_matrix(H, k),
                                bilinear_upsample_matrix(W, k)))    # (HW, kk)
        pooled = jnp.einsum('bcn,kn->bck', x2, P)                   # adaptive avg pool
        y = jnp.einsum('oc,bck->bok', w_stack[br], pooled)          # 1x1 conv
        y = jnp.maximum(y * sc_stack[br][None] + sh_stack[br][None], 0.0)  # BN + ReLU
        feats.append(jnp.einsum('bok,nk->bon', y, U))               # bilinear upsample
    return jnp.concatenate(feats, axis=1).reshape(B, -1, H, W)


if __name__ == "__main__":
    B, C, H, W = 2, 16, 16, 16
    OC = C // 4

    key = jax.random.PRNGKey(0)
    kx, kw, kg, kb, km, kv = jax.random.split(key, 6)

    x = jax.random.normal(kx, (B, C, H, W), dtype=jnp.float32)

    # Deterministic synthetic parameters for the 4 branches.
    w_stack = 0.2 * jax.random.normal(kw, (4, OC, C), dtype=jnp.float32)   # 1x1 conv, no bias
    gamma = 0.5 + jax.random.uniform(kg, (4, OC), dtype=jnp.float32)
    beta = 0.1 * jax.random.normal(kb, (4, OC), dtype=jnp.float32)
    running_mean = 0.1 * jax.random.normal(km, (4, OC), dtype=jnp.float32)
    running_var = 0.5 + jax.random.uniform(kv, (4, OC), dtype=jnp.float32)
    eps = 1e-5
    inv_std = gamma / jnp.sqrt(running_var + eps)
    sc_stack = inv_std[..., None]                             # (4, OC, 1)  BN scale
    sh_stack = (beta - running_mean * inv_std)[..., None]     # (4, OC, 1)  BN shift

    out = pyramid_pooling(x, w_stack, sc_stack, sh_stack)
    out = jax.block_until_ready(out)

    ref = reference(x, w_stack, sc_stack, sh_stack)
    np.testing.assert_allclose(np.asarray(out), np.asarray(ref), rtol=1e-4, atol=1e-4)
    assert out.shape == (B, C + 4 * OC, H, W)

    print("KERNEL_OK")
</pallas_src>

<mosaic_0001>
module attributes {stable_mosaic.version = 11 : i64} {
  func.func @pyramid_kernel(%arg0: i32, %arg1: memref<16x512xf32, #tpu.memory_space<vmem>>, %arg2: memref<16x16xf32, #tpu.memory_space<vmem>>, %arg3: memref<512x256xf32, #tpu.memory_space<vmem>>, %arg4: memref<16x256xf32, #tpu.memory_space<vmem>>, %arg5: memref<16x256xf32, #tpu.memory_space<vmem>>, %arg6: memref<256x512xf32, #tpu.memory_space<vmem>>, %arg7: memref<32x512xf32, #tpu.memory_space<vmem>>) attributes {dimension_semantics = [#tpu.dimension_semantics<arbitrary>], iteration_bounds = array<i64: 1>, scalar_prefetch = 0 : i64, scratch_operands = 0 : i64, tpu.core_type = #tpu.core_type<tc>, window_params = [{pipeline_mode = #tpu.pipeline_mode<synchronous>, transform_indices = @transform_0, window_bounds = array<i64: 16, 512>}, {pipeline_mode = #tpu.pipeline_mode<synchronous>, transform_indices = @transform_1, window_bounds = array<i64: 16, 16>}, {pipeline_mode = #tpu.pipeline_mode<synchronous>, transform_indices = @transform_2, window_bounds = array<i64: 512, 256>}, {pipeline_mode = #tpu.pipeline_mode<synchronous>, transform_indices = @transform_3, window_bounds = array<i64: 16, 256>}, {pipeline_mode = #tpu.pipeline_mode<synchronous>, transform_indices = @transform_4, window_bounds = array<i64: 16, 256>}, {pipeline_mode = #tpu.pipeline_mode<synchronous>, transform_indices = @transform_5, window_bounds = array<i64: 256, 512>}, {pipeline_mode = #tpu.pipeline_mode<synchronous>, transform_indices = @transform_6, window_bounds = array<i64: 32, 512>}]} {
    %c0 = arith.constant 0 : index
    %c0_0 = arith.constant 0 : index
    %0 = vector.load %arg1[%c0, %c0_0] : memref<16x512xf32, #tpu.memory_space<vmem>>, vector<16x512xf32>
    %c0_1 = arith.constant 0 : index
    %c0_2 = arith.constant 0 : index
    %1 = vector.load %arg7[%c0_1, %c0_2] : memref<32x512xf32, #tpu.memory_space<vmem>>, vector<16x512xf32>
    tpu.vector_store %arg7[%c0_1, %c0_2], %0 {strides = array<i32>} : memref<32x512xf32, #tpu.memory_space<vmem>>, vector<16x512xf32>,
    %c0_3 = arith.constant 0 : index
    %c0_4 = arith.constant 0 : index
    %2 = vector.load %arg2[%c0_3, %c0_4] : memref<16x16xf32, #tpu.memory_space<vmem>>, vector<16x16xf32>
    %cst = arith.constant dense<0.000000e+00> : vector<16x512xf32>
    %3 = tpu.matmul %2, %0, %cst {dimension_numbers = #tpu.dot_dimension_numbers<[1], [0], [0], [1], [0, 0, 1, 1], [], []>} : vector<16x16xf32>, vector<16x512xf32>, vector<16x512xf32> -> vector<16x512xf32>
    %c0_5 = arith.constant 0 : index
    %c0_6 = arith.constant 0 : index
    %4 = vector.load %arg3[%c0_5, %c0_6] : memref<512x256xf32, #tpu.memory_space<vmem>>, vector<512x256xf32>
    %cst_7 = arith.constant dense<0.000000e+00> : vector<16x256xf32>
    %5 = tpu.matmul %3, %4, %cst_7 {dimension_numbers = #tpu.dot_dimension_numbers<[1], [0], [0], [1], [0, 0, 1, 1], [], []>} : vector<16x512xf32>, vector<512x256xf32>, vector<16x256xf32> -> vector<16x256xf32>
    %c0_8 = arith.constant 0 : index
    %c0_9 = arith.constant 0 : index
    %6 = vector.load %arg4[%c0_8, %c0_9] : memref<16x256xf32, #tpu.memory_space<vmem>>, vector<16x256xf32>
    %7 = arith.addf %5, %6 : vector<16x256xf32>
    %cst_10 = arith.constant 0.000000e+00 : f32
    %8 = vector.broadcast %cst_10 : f32 to vector<16x256xf32>
    %9 = arith.maximumf %7, %8 : vector<16x256xf32>
    %c0_11 = arith.constant 0 : index
    %c0_12 = arith.constant 0 : index
    %10 = vector.load %arg5[%c0_11, %c0_12] : memref<16x256xf32, #tpu.memory_space<vmem>>, vector<16x256xf32>
    %11 = arith.mulf %9, %10 : vector<16x256xf32>
    %c0_13 = arith.constant 0 : index
    %c0_14 = arith.constant 0 : index
    %12 = vector.load %arg6[%c0_13, %c0_14] : memref<256x512xf32, #tpu.memory_space<vmem>>, vector<256x512xf32>
    %cst_15 = arith.constant dense<0.000000e+00> : vector<16x512xf32>
    %13 = tpu.matmul %11, %12, %cst_15 {dimension_numbers = #tpu.dot_dimension_numbers<[1], [0], [0], [1], [0, 0, 1, 1], [], []>} : vector<16x256xf32>, vector<256x512xf32>, vector<16x512xf32> -> vector<16x512xf32>
    %c16 = arith.constant 16 : index
    %c0_16 = arith.constant 0 : index
    %14 = vector.load %arg7[%c16, %c0_16] : memref<32x512xf32, #tpu.memory_space<vmem>>, vector<16x512xf32>
    tpu.vector_store %arg7[%c16, %c0_16], %13 {strides = array<i32>} : memref<32x512xf32, #tpu.memory_space<vmem>>, vector<16x512xf32>,
    return
  }
  func.func @transform_0(%arg0: i32) -> (i32, i32) {
    %c0_i32 = arith.constant 0 : i32
    %c0_i32_0 = arith.constant 0 : i32
    %c0_i32_1 = arith.constant 0 : i32
    return %c0_i32, %c0_i32_0 : i32, i32
  }
  func.func @transform_1(%arg0: i32) -> (i32, i32) {
    %c0_i32 = arith.constant 0 : i32
    %c0_i32_0 = arith.constant 0 : i32
    %c0_i32_1 = arith.constant 0 : i32
    return %c0_i32, %c0_i32_0 : i32, i32
  }
  func.func @transform_2(%arg0: i32) -> (i32, i32) {
    %c0_i32 = arith.constant 0 : i32
    %c0_i32_0 = arith.constant 0 : i32
    %c0_i32_1 = arith.constant 0 : i32
    return %c0_i32, %c0_i32_0 : i32, i32
  }
  func.func @transform_3(%arg0: i32) -> (i32, i32) {
    %c0_i32 = arith.constant 0 : i32
    %c0_i32_0 = arith.constant 0 : i32
    %c0_i32_1 = arith.constant 0 : i32
    return %c0_i32, %c0_i32_0 : i32, i32
  }
  func.func @transform_4(%arg0: i32) -> (i32, i32) {
    %c0_i32 = arith.constant 0 : i32
    %c0_i32_0 = arith.constant 0 : i32
    %c0_i32_1 = arith.constant 0 : i32
    return %c0_i32, %c0_i32_0 : i32, i32
  }
  func.func @transform_5(%arg0: i32) -> (i32, i32) {
    %c0_i32 = arith.constant 0 : i32
    %c0_i32_0 = arith.constant 0 : i32
    %c0_i32_1 = arith.constant 0 : i32
    return %c0_i32, %c0_i32_0 : i32, i32
  }
  func.func @transform_6(%arg0: i32) -> (i32, i32) {
    %c0_i32 = arith.constant 0 : i32
    %c0_i32_0 = arith.constant 0 : i32
    %c0_i32_1 = arith.constant 0 : i32
    return %c0_i32, %c0_i32_0 : i32, i32
  }
}

</mosaic_0001>

<llo_original>
// kernel: tpu_custom_call.1
$region0: #{tpu_custom_call.1}
  #allocation0 [shape = 'u32[]', space=smem, size = 0x4, offset = 0x4, fixed_abs, tag = 'smem constant byte address 0x4 - core index']
  #allocation1 [shape = 'u32[144,128]{1,0:T(1,128)}', space=vmem, size = 0x12000, scoped, tag = 'internal scratch']
  %s0 = inlined_call_operand.hbm [shape: f32[16,512], index: 0, kind: input, shape index: {}]
  %s1 = inlined_call_operand.hbm [shape: f32[16,16], index: 1, kind: input, shape index: {}]
  %s2 = inlined_call_operand.hbm [shape: f32[512,256], index: 2, kind: input, shape index: {}]
  %s3 = inlined_call_operand.hbm [shape: f32[16,256], index: 3, kind: input, shape index: {}]
  %s4 = inlined_call_operand.hbm [shape: f32[16,256], index: 4, kind: input, shape index: {}]
  %s5 = inlined_call_operand.hbm [shape: f32[256,512], index: 5, kind: input, shape index: {}]
  %s6 = inlined_call_operand.hbm [shape: f32[32,512], index: 6, kind: output, shape index: {}]
  %s7 = sld [smem:[#allocation0]]
  $region58: #{tpu_custom_call.1} parent=0
    _
  %s9 = ssub.s32 1, %s7
  %s10 = scalar_select 0, %s9, %s7
  $region1: #{tpu_custom_call.1} parent=0
    #allocation2 [shape = 'u8[32768]{0}', space=vmem, size = 0x8000, scoped, tag = 'input window, operand 0, single buffered']
    #allocation3 [shape = 's32[1]{0}', space=sflag, size = 0x4, scoped, tag = 'scoped memory for tpu_custom_call.1']
    #allocation4 [shape = 's32[1]{0}', space=sflag, size = 0x4, scoped, tag = 'scoped memory for tpu_custom_call.1']
    #allocation5 [shape = 'u8[8192]{0}', space=vmem, size = 0x2000, scoped, tag = 'input window, operand 1, single buffered']
    #allocation6 [shape = 's32[1]{0}', space=sflag, size = 0x4, scoped, tag = 'scoped memory for tpu_custom_call.1']
    #allocation7 [shape = 'u8[524288]{0}', space=vmem, size = 0x80000, scoped, tag = 'input window, operand 2, single buffered']
    #allocation8 [shape = 'u8[16384]{0}', space=vmem, size = 0x4000, scoped, tag = 'input window, operand 3, single buffered']
    #allocation9 [shape = 's32[1]{0}', space=sflag, size = 0x4, scoped, tag = 'scoped memory for tpu_custom_call.1']
    #allocation10 [shape = 'u8[16384]{0}', space=vmem, size = 0x4000, scoped, tag = 'input window, operand 4, single buffered']
    #allocation11 [shape = 'u8[524288]{0}', space=vmem, size = 0x80000, scoped, tag = 'input window, operand 5, single buffered']
    #allocation12 [shape = 's32[1]{0}', space=sflag, size = 0x4, scoped, tag = 'scoped memory for tpu_custom_call.1']
    #allocation13 [shape = 'u8[65536]{0}', space=vmem, size = 0x10000, scoped, tag = 'output window, operand 0, single buffered']
    %11 = vsyncpa [#allocation3], 0
    %12 = vsyncpa [#allocation6], 0
    %13 = vsyncpa [#allocation9], 0
    %14 = vsyncpa [#allocation12], 0
    %15 = vsyncpa [#allocation4], 0
    // Predicated region
    $region2: #{tpu_custom_call.1} parent=1 // pred_check
      _
    $region3: #{tpu_custom_call.1} parent=1 // pred_check_branch
      %17 = sbr.rel (0) target = $region5
    $region4: #{tpu_custom_call.1} parent=1 // pred_region
      %s19 = ssub.s32 1024, 1024
      %20 = vsyncadd [#allocation3], %s19
      %s21 = sshll.u32 [#allocation2], 4
      %s22 = int_to_ptr.vmem [resolvable:$true] %s21
      %27 = dma.hbm_to_vmem [thread:$0]  %s0, 1024, %s22, [#allocation3], 512, 512, 32
    $region5: #{tpu_custom_call.1} parent=1 // pred_fallthru
      _
    // Predicated region
    $region6: #{tpu_custom_call.1} parent=1 // pred_check
      _
    $region7: #{tpu_custom_call.1} parent=1 // pred_check_branch
      %29 = sbr.rel (0) target = $region9
    $region8: #{tpu_custom_call.1} parent=1 // pred_region
      %s31 = ssub.s32 256, 256
      %32 = vsyncadd [#allocation6], %s31
      %s33 = sshll.u32 [#allocation5], 4
      %s34 = int_to_ptr.vmem [resolvable:$true] %s33
      %39 = dma.hbm_to_vmem [thread:$0]  %s1, 256, %s34, [#allocation6], 128, 128, 8
    $region9: #{tpu_custom_call.1} parent=1 // pred_fallthru
      _
    // Predicated region
    $region10: #{tpu_custom_call.1} parent=1 // pred_check
      _
    $region11: #{tpu_custom_call.1} parent=1 // pred_check_branch
      %41 = sbr.rel (0) target = $region13
    $region12: #{tpu_custom_call.1} parent=1 // pred_region
      %s43 = ssub.s32 16384, 16384
      %44 = vsyncadd [#allocation6], %s43
      %s45 = sshll.u32 [#allocation7], 4
      %s46 = int_to_ptr.vmem [resolvable:$true] %s45
      %51 = dma.hbm_to_vmem [thread:$0]  %s2, 16384, %s46, [#allocation6], 256, 256, 16
    $region13: #{tpu_custom_call.1} parent=1 // pred_fallthru
      _
    // Predicated region
    $region14: #{tpu_custom_call.1} parent=1 // pred_check
      _
    $region15: #{tpu_custom_call.1} parent=1 // pred_check_branch
      %53 = sbr.rel (0) target = $region17
    $region16: #{tpu_custom_call.1} parent=1 // pred_region
      %s55 = ssub.s32 512, 512
      %56 = vsyncadd [#allocation9], %s55
      %s57 = sshll.u32 [#allocation8], 4
      %s58 = int_to_ptr.vmem [resolvable:$true] %s57
      %63 = dma.hbm_to_vmem [thread:$0]  %s3, 512, %s58, [#allocation9], 256, 256, 16
    $region17: #{tpu_custom_call.1} parent=1 // pred_fallthru
      _
    // Predicated region
    $region18: #{tpu_custom_call.1} parent=1 // pred_check
      _
    $region19: #{tpu_custom_call.1} parent=1 // pred_check_branch
      %65 = sbr.rel (0) target = $region21
    $region20: #{tpu_custom_call.1} parent=1 // pred_region
      %s67 = ssub.s32 512, 512
      %68 = vsyncadd [#allocation9], %s67
      %s69 = sshll.u32 [#allocation10], 4
      %s70 = int_to_ptr.vmem [resolvable:$true] %s69
      %75 = dma.hbm_to_vmem [thread:$0]  %s4, 512, %s70, [#allocation9], 256, 256, 16
    $region21: #{tpu_custom_call.1} parent=1 // pred_fallthru
      _
    // Predicated region
    $region22: #{tpu_custom_call.1} parent=1 // pred_check
      _
    $region23: #{tpu_custom_call.1} parent=1 // pred_check_branch
      %77 = sbr.rel (0) target = $region25
    $region24: #{tpu_custom_call.1} parent=1 // pred_region
      %s79 = ssub.s32 16384, 16384
      %80 = vsyncadd [#allocation12], %s79
      %s81 = sshll.u32 [#allocation11], 4
      %s82 = int_to_ptr.vmem [resolvable:$true] %s81
      %87 = dma.hbm_to_vmem [thread:$0]  %s5, 16384, %s82, [#allocation12], 512, 512, 32
    $region25: #{tpu_custom_call.1} parent=1 // pred_fallthru
      _
    // Predicated region
    $region26: #{tpu_custom_call.1} parent=1 // pred_check
      _
    $region27: #{tpu_custom_call.1} parent=1 // pred_check_branch
      %89 = sbr.rel (0) target = $region29
    $region28: #{tpu_custom_call.1} parent=1 // pred_region
      %90 = dma.done [#allocation3], 1024
    $region29: #{tpu_custom_call.1} parent=1 // pred_fallthru
      _
    // Predicated region
    $region30: #{tpu_custom_call.1} parent=1 // pred_check
      _
    $region31: #{tpu_custom_call.1} parent=1 // pred_check_branch
      %92 = sbr.rel (0) target = $region33
    $region32: #{tpu_custom_call.1} parent=1 // pred_region
      %93 = dma.done [#allocation6], 256
    $region33: #{tpu_custom_call.1} parent=1 // pred_fallthru
      _
    // Predicated region
    $region34: #{tpu_custom_call.1} parent=1 // pred_check
      _
    $region35: #{tpu_custom_call.1} parent=1 // pred_check_branch
      %95 = sbr.rel (0) target = $region37
    $region36: #{tpu_custom_call.1} parent=1 // pred_region
      %96 = dma.done [#allocation6], 16384
    $region37: #{tpu_custom_call.1} parent=1 // pred_fallthru
      _
    // Predicated region
    $region38: #{tpu_custom_call.1} parent=1 // pred_check
      _
    $region39: #{tpu_custom_call.1} parent=1 // pred_check_branch
      %98 = sbr.rel (0) target = $region41
    $region40: #{tpu_custom_call.1} parent=1 // pred_region
      %99 = dma.done [#allocation9], 512
    $region41: #{tpu_custom_call.1} parent=1 // pred_fallthru
      _
    // Predicated region
    $region42: #{tpu_custom_call.1} parent=1 // pred_check
      _
    $region43: #{tpu_custom_call.1} parent=1 // pred_check_branch
      %101 = sbr.rel (0) target = $region45
    $region44: #{tpu_custom_call.1} parent=1 // pred_region
      %102 = dma.done [#allocation9], 512
    $region45: #{tpu_custom_call.1} parent=1 // pred_fallthru
      _
    // Predicated region
    $region46: #{tpu_custom_call.1} parent=1 // pred_check
      _
    $region47: #{tpu_custom_call.1} parent=1 // pred_check_branch
      %104 = sbr.rel (0) target = $region49
    $region48: #{tpu_custom_call.1} parent=1 // pred_region
      %105 = dma.done [#allocation12], 16384
    $region49: #{tpu_custom_call.1} parent=1 // pred_fallthru
      _
    %v106 = vld [vmem:[#allocation2] sm:$0xff]
    %v107 = vld [vmem:[#allocation2 + $0x8] sm:$0xff]
    %v108 = vld [vmem:[#allocation2 + $0x10] sm:$0xff]
    %v109 = vld [vmem:[#allocation2 + $0x18] sm:$0xff]
    %v110 = vld [vmem:[#allocation2 + $0x20] sm:$0xff]
    %v111 = vld [vmem:[#allocation2 + $0x28] sm:$0xff]
    %v112 = vld [vmem:[#allocation2 + $0x30] sm:$0xff]
    %v113 = vld [vmem:[#allocation2 + $0x38] sm:$0xff]
    %114 = vst [vmem:[#allocation13] sm:$0xff] %v106
    %115 = vst [vmem:[#allocation13 + $0x8] sm:$0xff] %v107
    %116 = vst [vmem:[#allocation13 + $0x10] sm:$0xff] %v108
    %117 = vst [vmem:[#allocation13 + $0x18] sm:$0xff] %v109
    %118 = vst [vmem:[#allocation13 + $0x20] sm:$0xff] %v110
    %119 = vst [vmem:[#allocation13 + $0x28] sm:$0xff] %v111
    %120 = vst [vmem:[#allocation13 + $0x30] sm:$0xff] %v112
    %121 = vst [vmem:[#allocation13 + $0x38] sm:$0xff] %v113
    %v122 = vld [vmem:[#allocation5] sm:$0xff]
    %v123 = vld [vmem:[#allocation5 + $0x8] sm:$0xff]
    %vm124 = vcmask 130048
    %v126 = vsel %vm124, %v122, 0
    %v129 = vsel %vm124, %v123, 0
    %131 = vmatprep.subr.mxu0 %v107
    %132 = vmatpush1.msra.mxu0 %v106
    %133 = vmatprep.subr.mxu0 %v111
    %134 = vmatpush1.msra.mxu0 %v110
    %135 = vmatprep.subr.mxu0 0.0
    %136 = vmatpush1.msra.mxu0 0.0
    %137 = vmatprep.subr.mxu0 0.0
    %138 = vmatpush1.msra.mxu0 0.0
    %139 = vmatprep.subr.mxu0 0.0
    %140 = vmatpush1.msra.mxu0 0.0
    %141 = vmatprep.subr.mxu0 0.0
    %142 = vmatpush1.msra.mxu0 0.0
    %143 = vmatprep.subr.mxu0 0.0
    %144 = vmatpush1.msra.mxu0 0.0
    %145 = vmatprep.subr.mxu0 0.0
    %146 = vmatpush1.msra.mxu0 0.0
    %147 = vmatprep.subr.mxu0 0.0
    %148 = vmatpush1.msra.mxu0 0.0
    %149 = vmatprep.subr.mxu0 0.0
    %150 = vmatpush1.msra.mxu0 0.0
    %151 = vmatprep.subr.mxu0 0.0
    %152 = vmatpush1.msra.mxu0 0.0
    %153 = vmatprep.subr.mxu0 0.0
    %154 = vmatpush1.msra.mxu0 0.0
    %155 = vmatprep.subr.mxu0 0.0
    %156 = vmatpush1.msra.mxu0 0.0
    %157 = vmatprep.subr.mxu0 0.0
    %158 = vmatpush1.msra.mxu0 0.0
    %159 = vmatprep.subr.mxu0 0.0
    %160 = vmatpush1.msra.mxu0 0.0
    %161 = vmatprep.subr.mxu0 0.0
    %162 = vmatpush1.msra.mxu0 0.0
    %163 = vmatprep.subr.mxu0 0.0
    %164 = vmatpush1.msra.mxu0 0.0
    %165 = vmatprep.subr.mxu0 0.0
    %166 = vmatpush1.msra.mxu0 0.0
    %167 = vmatprep.subr.mxu0 0.0
    %168 = vmatpush1.msra.mxu0 0.0
    %169 = vmatprep.subr.mxu0 0.0
    %170 = vmatpush1.msra.mxu0 0.0
    %171 = vmatprep.subr.mxu0 0.0
    %172 = vmatpush1.msra.mxu0 0.0
    %173 = vmatprep.subr.mxu0 0.0
    %174 = vmatpush1.msra.mxu0 0.0
    %175 = vmatprep.subr.mxu0 0.0
    %176 = vmatpush1.msra.mxu0 0.0
    %177 = vmatprep.subr.mxu0 0.0
    %178 = vmatpush1.msra.mxu0 0.0
    %179 = vmatprep.subr.mxu0 0.0
    %180 = vmatpush1.msra.mxu0 0.0
    %181 = vmatprep.subr.mxu0 0.0
    %182 = vmatpush1.msra.mxu0 0.0
    %183 = vmatprep.subr.mxu0 0.0
    %184 = vmatpush1.msra.mxu0 0.0
    %185 = vmatprep.subr.mxu0 0.0
    %186 = vmatpush1.msra.mxu0 0.0
    %187 = vmatprep.subr.mxu0 0.0
    %188 = vmatpush1.msra.mxu0 0.0
    %189 = vmatprep.subr.mxu0 0.0
    %190 = vmatpush1.msra.mxu0 0.0
    %191 = vmatprep.subr.mxu0 0.0
    %192 = vmatpush1.msra.mxu0 0.0
    %193 = vmatprep.subr.mxu0 0.0
    %194 = vmatpush1.msra.mxu0 0.0
    %195 = vmatprep.mubr.f32.mxu0 0.0
    %196 = vmatmul.mubr.f32.gmra.mrb[0].mxu0 %v126
    %v197 = vpop.f32.mrb[0].mxu0
    %v198 = vadd.f32 0.0, %v197
    %v199 = vpop.f32.mrb[0].mxu0
    %v200 = vadd.f32 0.0, %v199
    %201 = vmatprep.mubr.f32.mxu0 0.0
    %202 = vmatmul.mubr.f32.gmra.mrb[0].mxu0 %v129
    %v203 = vpop.f32.mrb[0].mxu0
    %v204 = vadd.f32 0.0, %v203
    %v205 = vpop.f32.mrb[0].mxu0
    %v206 = vadd.f32 0.0, %v205
    %207 = vdwg.mxu0
    %208 = vmatprep.subr.mxu0 %v109
    %209 = vmatpush1.msra.mxu0 %v108
    %210 = vmatprep.subr.mxu0 %v113
    %211 = vmatpush1.msra.mxu0 %v112
    %212 = vmatprep.subr.mxu0 0.0
    %213 = vmatpush1.msra.mxu0 0.0
    %214 = vmatprep.subr.mxu0 0.0
    %215 = vmatpush1.msra.mxu0 0.0
    %216 = vmatprep.subr.mxu0 0.0
    %217 = vmatpush1.msra.mxu0 0.0
    %218 = vmatprep.subr.mxu0 0.0
    %219 = vmatpush1.msra.mxu0 0.0
    %220 = vmatprep.subr.mxu0 0.0
    %221 = vmatpush1.msra.mxu0 0.0
    %222 = vmatprep.subr.mxu0 0.0
    %223 = vmatpush1.msra.mxu0 0.0
    %224 = vmatprep.subr.mxu0 0.0
    %225 = vmatpush1.msra.mxu0 0.0
    %226 = vmatprep.subr.mxu0 0.0
    %227 = vmatpush1.msra.mxu0 0.0
    %228 = vmatprep.subr.mxu0 0.0
    %229 = vmatpush1.msra.mxu0 0.0
    %230 = vmatprep.subr.mxu0 0.0
    %231 = vmatpush1.msra.mxu0 0.0
    %232 = vmatprep.subr.mxu0 0.0
    %233 = vmatpush1.msra.mxu0 0.0
    %234 = vmatprep.subr.mxu0 0.0
    %235 = vmatpush1.msra.mxu0 0.0
    %236 = vmatprep.subr.mxu0 0.0
    %237 = vmatpush1.msra.mxu0 0.0
    %238 = vmatprep.subr.mxu0 0.0
    %239 = vmatpush1.msra.mxu0 0.0
    %240 = vmatprep.subr.mxu0 0.0
    %241 = vmatpush1.msra.mxu0 0.0
    %242 = vmatprep.subr.mxu0 0.0
    %243 = vmatpush1.msra.mxu0 0.0
    %244 = vmatprep.subr.mxu0 0.0
    %245 = vmatpush1.msra.mxu0 0.0
    %246 = vmatprep.subr.mxu0 0.0
    %247 = vmatpush1.msra.mxu0 0.0
    %248 = vmatprep.subr.mxu0 0.0
    %249 = vmatpush1.msra.mxu0 0.0
    %250 = vmatprep.subr.mxu0 0.0
    %251 = vmatpush1.msra.mxu0 0.0
    %252 = vmatprep.subr.mxu0 0.0
    %253 = vmatpush1.msra.mxu0 0.0
    %254 = vmatprep.subr.mxu0 0.0
    %255 = vmatpush1.msra.mxu0 0.0
    %256 = vmatprep.subr.mxu0 0.0
    %257 = vmatpush1.msra.mxu0 0.0
    %258 = vmatprep.subr.mxu0 0.0
    %259 = vmatpush1.msra.mxu0 0.0
    %260 = vmatprep.subr.mxu0 0.0
    %261 = vmatpush1.msra.mxu0 0.0
    %262 = vmatprep.subr.mxu0 0.0
    %263 = vmatpush1.msra.mxu0 0.0
    %264 = vmatprep.subr.mxu0 0.0
    %265 = vmatpush1.msra.mxu0 0.0
    %266 = vmatprep.subr.mxu0 0.0
    %267 = vmatpush1.msra.mxu0 0.0
    %268 = vmatprep.subr.mxu0 0.0
    %269 = vmatpush1.msra.mxu0 0.0
    %270 = vmatprep.subr.mxu0 0.0
    %271 = vmatpush1.msra.mxu0 0.0
    %272 = vmatprep.mubr.f32.mxu0 0.0
    %273 = vmatmul.mubr.f32.gmra.mrb[0].mxu0 %v126
    %v274 = vpop.f32.mrb[0].mxu0
    %v275 = vadd.f32 0.0, %v274
    %v276 = vpop.f32.mrb[0].mxu0
    %v277 = vadd.f32 0.0, %v276
    %278 = vmatprep.mubr.f32.mxu0 0.0
    %279 = vmatmul.mubr.f32.gmra.mrb[0].mxu0 %v129
    %v280 = vpop.f32.mrb[0].mxu0
    %v281 = vadd.f32 0.0, %v280
    %v282 = vpop.f32.mrb[0].mxu0
    %v283 = vadd.f32 0.0, %v282
    %284 = vdwg.mxu0
    %v285 = vld [vmem:[#allocation7] sm:$0xff]
    %v286 = vld [vmem:[#allocation7 + $0x8] sm:$0xff]
    %v287 = vld [vmem:[#allocation7 + $0x10] sm:$0xff]
    %v288 = vld [vmem:[#allocation7 + $0x18] sm:$0xff]
    %v289 = vld [vmem:[#allocation7 + $0x20] sm:$0xff]
    %v290 = vld [vmem:[#allocation7 + $0x28] sm:$0xff]
    %v291 = vld [vmem:[#allocation7 + $0x30] sm:$0xff]
    %v292 = vld [vmem:[#allocation7 + $0x38] sm:$0xff]
    %v293 = vld [vmem:[#allocation7 + $0x40] sm:$0xff]
    %v294 = vld [vmem:[#allocation7 + $0x48] sm:$0xff]
    %v295 = vld [vmem:[#allocation7 + $0x50] sm:$0xff]
    %v296 = vld [vmem:[#allocation7 + $0x58] sm:$0xff]
    %v297 = vld [vmem:[#allocation7 + $0x60] sm:$0xff]
    %v298 = vld [vmem:[#allocation7 + $0x68] sm:$0xff]
    %v299 = vld [vmem:[#allocation7 + $0x70] sm:$0xff]
    %v300 = vld [vmem:[#allocation7 + $0x78] sm:$0xff]
    %v301 = vld [vmem:[#allocation7 + $0x80] sm:$0xff]
    %v302 = vld [vmem:[#allocation7 + $0x88] sm:$0xff]
    %v303 = vld [vmem:[#allocation7 + $0x90] sm:$0xff]
    %v304 = vld [vmem:[#allocation7 + $0x98] sm:$0xff]
    %v305 = vld [vmem:[#allocation7 + $0xa0] sm:$0xff]
    %v306 = vld [vmem:[#allocation7 + $0xa8] sm:$0xff]
    %v307 = vld [vmem:[#allocation7 + $0xb0] sm:$0xff]
    %v308 = vld [vmem:[#allocation7 + $0xb8] sm:$0xff]
    %v309 = vld [vmem:[#allocation7 + $0xc0] sm:$0xff]
    %v310 = vld [vmem:[#allocation7 + $0xc8] sm:$0xff]
    %v311 = vld [vmem:[#allocation7 + $0xd0] sm:$0xff]
    %v312 = vld [vmem:[#allocation7 + $0xd8] sm:$0xff]
    %v313 = vld [vmem:[#allocation7 + $0xe0] sm:$0xff]
    %v314 = vld [vmem:[#allocation7 + $0xe8] sm:$0xff]
    %v315 = vld [vmem:[#allocation7 + $0xf0] sm:$0xff]
    %v316 = vld [vmem:[#allocation7 + $0xf8] sm:$0xff]
    %v317 = vld [vmem:[#allocation7 + $0x100] sm:$0xff]
    %v318 = vld [vmem:[#allocation7 + $0x108] sm:$0xff]
    %v319 = vld [vmem:[#allocation7 + $0x110] sm:$0xff]
    %v320 = vld [vmem:[#allocation7 + $0x118] sm:$0xff]
    %v321 = vld [vmem:[#allocation7 + $0x120] sm:$0xff]
    %v322 = vld [vmem:[#allocation7 + $0x128] sm:$0xff]
    %v323 = vld [vmem:[#allocation7 + $0x130] sm:$0xff]
    %v324 = vld [vmem:[#allocation7 + $0x138] sm:$0xff]
    %v325 = vld [vmem:[#allocation7 + $0x140] sm:$0xff]
    %v326 = vld [vmem:[#allocation7 + $0x148] sm:$0xff]
    %v327 = vld [vmem:[#allocation7 + $0x150] sm:$0xff]
    %v328 = vld [vmem:[#allocation7 + $0x158] sm:$0xff]
    %v329 = vld [vmem:[#allocation7 + $0x160] sm:$0xff]
    %v330 = vld [vmem:[#allocation7 + $0x168] sm:$0xff]
    %v331 = vld [vmem:[#allocation7 + $0x170] sm:$0xff]
    %v332 = vld [vmem:[#allocation7 + $0x178] sm:$0xff]
    %v333 = vld [vmem:[#allocation7 + $0x180] sm:$0xff]
    %v334 = vld [vmem:[#allocation7 + $0x188] sm:$0xff]
    %v335 = vld [vmem:[#allocation7 + $0x190] sm:$0xff]
    %v336 = vld [vmem:[#allocation7 + $0x198] sm:$0xff]
    %v337 = vld [vmem:[#allocation7 + $0x1a0] sm:$0xff]
    %v338 = vld [vmem:[#allocation7 + $0x1a8] sm:$0xff]
    %v339 = vld [vmem:[#allocation7 + $0x1b0] sm:$0xff]
    %v340 = vld [vmem:[#allocation7 + $0x1b8] sm:$0xff]
    %v341 = vld [vmem:[#allocation7 + $0x1c0] sm:$0xff]
    %v342 = vld [vmem:[#allocation7 + $0x1c8] sm:$0xff]
    %v343 = vld [vmem:[#allocation7 + $0x1d0] sm:$0xff]
    %v344 = vld [vmem:[#allocation7 + $0x1d8] sm:$0xff]
    %v345 = vld [vmem:[#allocation7 + $0x1e0] sm:$0xff]
    %v346 = vld [vmem:[#allocation7 + $0x1e8] sm:$0xff]
    %v347 = vld [vmem:[#allocation7 + $0x1f0] sm:$0xff]
    %v348 = vld [vmem:[#allocation7 + $0x1f8] sm:$0xff]
    %v349 = vld [vmem:[#allocation7 + $0x200] sm:$0xff]
    %v350 = vld [vmem:[#allocation7 + $0x208] sm:$0xff]
    %v351 = vld [vmem:[#allocation7 + $0x210] sm:$0xff]
    %v352 = vld [vmem:[#allocation7 + $0x218] sm:$0xff]
    %v353 = vld [vmem:[#allocation7 + $0x220] sm:$0xff]
    %v354 = vld [vmem:[#allocation7 + $0x228] sm:$0xff]
    %v355 = vld [vmem:[#allocation7 + $0x230] sm:$0xff]
    %v356 = vld [vmem:[#allocation7 + $0x238] sm:$0xff]
    %v357 = vld [vmem:[#allocation7 + $0x240] sm:$0xff]
    %v358 = vld [vmem:[#allocation7 + $0x248] sm:$0xff]
    %v359 = vld [vmem:[#allocation7 + $0x250] sm:$0xff]
    %v360 = vld [vmem:[#allocation7 + $0x258] sm:$0xff]
    %v361 = vld [vmem:[#allocation7 + $0x260] sm:$0xff]
    %v362 = vld [vmem:[#allocation7 + $0x268] sm:$0xff]
    %v363 = vld [vmem:[#allocation7 + $0x270] sm:$0xff]
    %v364 = vld [vmem:[#allocation7 + $0x278] sm:$0xff]
    %v365 = vld [vmem:[#allocation7 + $0x280] sm:$0xff]
    %v366 = vld [vmem:[#allocation7 + $0x288] sm:$0xff]
    %v367 = vld [vmem:[#allocation7 + $0x290] sm:$0xff]
    %v368 = vld [vmem:[#allocation7 + $0x298] sm:$0xff]
    %v369 = vld [vmem:[#allocation7 + $0x2a0] sm:$0xff]
    %v370 = vld [vmem:[#allocation7 + $0x2a8] sm:$0xff]
    %v371 = vld [vmem:[#allocation7 + $0x2b0] sm:$0xff]
    %v372 = vld [vmem:[#allocation7 + $0x2b8] sm:$0xff]
    %v373 = vld [vmem:[#allocation7 + $0x2c0] sm:$0xff]
    %v374 = vld [vmem:[#allocation7 + $0x2c8] sm:$0xff]
    %v375 = vld [vmem:[#allocation7 + $0x2d0] sm:$0xff]
    %v376 = vld [vmem:[#allocation7 + $0x2d8] sm:$0xff]
    %v377 = vld [vmem:[#allocation7 + $0x2e0] sm:$0xff]
    %v378 = vld [vmem:[#allocation7 + $0x2e8] sm:$0xff]
    %v379 = vld [vmem:[#allocation7 + $0x2f0] sm:$0xff]
    %v380 = vld [vmem:[#allocation7 + $0x2f8] sm:$0xff]
    %v381 = vld [vmem:[#allocation7 + $0x300] sm:$0xff]
    %v382 = vld [vmem:[#allocation7 + $0x308] sm:$0xff]
    %v383 = vld [vmem:[#allocation7 + $0x310] sm:$0xff]
    %v384 = vld [vmem:[#allocation7 + $0x318] sm:$0xff]
    %v385 = vld [vmem:[#allocation7 + $0x320] sm:$0xff]
    %v386 = vld [vmem:[#allocation7 + $0x328] sm:$0xff]
    %v387 = vld [vmem:[#allocation7 + $0x330] sm:$0xff]
    %v388 = vld [vmem:[#allocation7 + $0x338] sm:$0xff]
    %v389 = vld [vmem:[#allocation7 + $0x340] sm:$0xff]
    %v390 = vld [vmem:[#allocation7 + $0x348] sm:$0xff]
    %v391 = vld [vmem:[#allocation7 + $0x350] sm:$0xff]
    %v392 = vld [vmem:[#allocation7 + $0x358] sm:$0xff]
    %v393 = vld [vmem:[#allocation7 + $0x360] sm:$0xff]
    %v394 = vld [vmem:[#allocation7 + $0x368] sm:$0xff]
    %v395 = vld [vmem:[#allocation7 + $0x370] sm:$0xff]
    %v396 = vld [vmem:[#allocation7 + $0x378] sm:$0xff]
    %v397 = vld [vmem:[#allocation7 + $0x380] sm:$0xff]
    %v398 = vld [vmem:[#allocation7 + $0x388] sm:$0xff]
    %v399 = vld [vmem:[#allocation7 + $0x390] sm:$0xff]
    %v400 = vld [vmem:[#allocation7 + $0x398] sm:$0xff]
    %v401 = vld [vmem:[#allocation7 + $0x3a0] sm:$0xff]
    %v402 = vld [vmem:[#allocation7 + $0x3a8] sm:$0xff]
    %v403 = vld [vmem:[#allocation7 + $0x3b0] sm:$0xff]
    %v404 = vld [vmem:[#allocation7 + $0x3b8] sm:$0xff]
    %v405 = vld [vmem:[#allocation7 + $0x3c0] sm:$0xff]
    %v406 = vld [vmem:[#allocation7 + $0x3c8] sm:$0xff]
    %v407 = vld [vmem:[#allocation7 + $0x3d0] sm:$0xff]
    %v408 = vld [vmem:[#allocation7 + $0x3d8] sm:$0xff]
    %v409 = vld [vmem:[#allocation7 + $0x3e0] sm:$0xff]
    %v410 = vld [vmem:[#allocation7 + $0x3e8] sm:$0xff]
    %v411 = vld [vmem:[#allocation7 + $0x3f0] sm:$0xff]
    %v412 = vld [vmem:[#allocation7 + $0x3f8] sm:$0xff]
    %v413 = vld [vmem:[#allocation8] sm:$0xff]
    %v414 = vld [vmem:[#allocation8 + $0x8] sm:$0xff]
    %v415 = vld [vmem:[#allocation8 + $0x10] sm:$0xff]
    %v416 = vld [vmem:[#allocation8 + $0x18] sm:$0xff]
    %417 = vmatprep.subr.mxu0 %v286
    %418 = vmatpush1.msra.mxu0 %v285
    %419 = vmatprep.subr.mxu0 %v288
    %420 = vmatpush1.msra.mxu0 %v287
    %421 = vmatprep.subr.mxu0 %v290
    %422 = vmatpush1.msra.mxu0 %v289
    %423 = vmatprep.subr.mxu0 %v292
    %424 = vmatpush1.msra.mxu0 %v291
    %425 = vmatprep.subr.mxu0 %v294
    %426 = vmatpush1.msra.mxu0 %v293
    %427 = vmatprep.subr.mxu0 %v296
    %428 = vmatpush1.msra.mxu0 %v295
    %429 = vmatprep.subr.mxu0 %v298
    %430 = vmatpush1.msra.mxu0 %v297
    %431 = vmatprep.subr.mxu0 %v300
    %432 = vmatpush1.msra.mxu0 %v299
    %433 = vmatprep.subr.mxu0 %v302
    %434 = vmatpush1.msra.mxu0 %v301
    %435 = vmatprep.subr.mxu0 %v304
    %436 = vmatpush1.msra.mxu0 %v303
    %437 = vmatprep.subr.mxu0 %v306
    %438 = vmatpush1.msra.mxu0 %v305
    %439 = vmatprep.subr.mxu0 %v308
    %440 = vmatpush1.msra.mxu0 %v307
    %441 = vmatprep.subr.mxu0 %v310
    %442 = vmatpush1.msra.mxu0 %v309
    %443 = vmatprep.subr.mxu0 %v312
    %444 = vmatpush1.msra.mxu0 %v311
    %445 = vmatprep.subr.mxu0 %v314
    %446 = vmatpush1.msra.mxu0 %v313
    %447 = vmatprep.subr.mxu0 %v316
    %448 = vmatpush1.msra.mxu0 %v315
    %449 = vmatprep.subr.mxu0 %v318
    %450 = vmatpush1.msra.mxu0 %v317
    %451 = vmatprep.subr.mxu0 %v320
    %452 = vmatpush1.msra.mxu0 %v319
    %453 = vmatprep.subr.mxu0 %v322
    %454 = vmatpush1.msra.mxu0 %v321
    %455 = vmatprep.subr.mxu0 %v324
    %456 = vmatpush1.msra.mxu0 %v323
    %457 = vmatprep.subr.mxu0 %v326
    %458 = vmatpush1.msra.mxu0 %v325
    %459 = vmatprep.subr.mxu0 %v328
    %460 = vmatpush1.msra.mxu0 %v327
    %461 = vmatprep.subr.mxu0 %v330
    %462 = vmatpush1.msra.mxu0 %v329
    %463 = vmatprep.subr.mxu0 %v332
    %464 = vmatpush1.msra.mxu0 %v331
    %465 = vmatprep.subr.mxu0 %v334
    %466 = vmatpush1.msra.mxu0 %v333
    %467 = vmatprep.subr.mxu0 %v336
    %468 = vmatpush1.msra.mxu0 %v335
    %469 = vmatprep.subr.mxu0 %v338
    %470 = vmatpush1.msra.mxu0 %v337
    %471 = vmatprep.subr.mxu0 %v340
    %472 = vmatpush1.msra.mxu0 %v339
    %473 = vmatprep.subr.mxu0 %v342
    %474 = vmatpush1.msra.mxu0 %v341
    %475 = vmatprep.subr.mxu0 %v344
    %476 = vmatpush1.msra.mxu0 %v343
    %477 = vmatprep.subr.mxu0 %v346
    %478 = vmatpush1.msra.mxu0 %v345
    %479 = vmatprep.subr.mxu0 %v348
    %480 = vmatpush1.msra.mxu0 %v347
    %481 = vmatprep.mubr.f32.mxu0 %v200
    %482 = vmatmul.mubr.f32.gmra.mrb[0].mxu0 %v198
    %v483 = vpop.f32.mrb[0].mxu0
    %v484 = vadd.f32 %v413, %v483
    %v485 = vpop.f32.mrb[0].mxu0
    %v486 = vadd.f32 %v414, %v485
    %487 = vmatprep.mubr.f32.mxu0 %v206
    %488 = vmatmul.mubr.f32.gmra.mrb[0].mxu0 %v204
    %v489 = vpop.f32.mrb[0].mxu0
    %v490 = vadd.f32 %v415, %v489
    %v491 = vpop.f32.mrb[0].mxu0
    %v492 = vadd.f32 %v416, %v491
    %493 = vdwg.mxu0
    %494 = vmatprep.subr.mxu0 %v350
    %495 = vmatpush1.msra.mxu0 %v349
    %496 = vmatprep.subr.mxu0 %v352
    %497 = vmatpush1.msra.mxu0 %v351
    %498 = vmatprep.subr.mxu0 %v354
    %499 = vmatpush1.msra.mxu0 %v353
    %500 = vmatprep.subr.mxu0 %v356
    %501 = vmatpush1.msra.mxu0 %v355
    %502 = vmatprep.subr.mxu0 %v358
    %503 = vmatpush1.msra.mxu0 %v357
    %504 = vmatprep.subr.mxu0 %v360
    %505 = vmatpush1.msra.mxu0 %v359
    %506 = vmatprep.subr.mxu0 %v362
    %507 = vmatpush1.msra.mxu0 %v361
    %508 = vmatprep.subr.mxu0 %v364
    %509 = vmatpush1.msra.mxu0 %v363
    %510 = vmatprep.subr.mxu0 %v366
    %511 = vmatpush1.msra.mxu0 %v365
    %512 = vmatprep.subr.mxu0 %v368
    %513 = vmatpush1.msra.mxu0 %v367
    %514 = vmatprep.subr.mxu0 %v370
    %515 = vmatpush1.msra.mxu0 %v369
    %516 = vmatprep.subr.mxu0 %v372
    %517 = vmatpush1.msra.mxu0 %v371
    %518 = vmatprep.subr.mxu0 %v374
    %519 = vmatpush1.msra.mxu0 %v373
    %520 = vmatprep.subr.mxu0 %v376
    %521 = vmatpush1.msra.mxu0 %v375
    %522 = vmatprep.subr.mxu0 %v378
    %523 = vmatpush1.msra.mxu0 %v377
    %524 = vmatprep.subr.mxu0 %v380
    %525 = vmatpush1.msra.mxu0 %v379
    %526 = vmatprep.subr.mxu0 %v382
    %527 = vmatpush1.msra.mxu0 %v381
    %528 = vmatprep.subr.mxu0 %v384
    %529 = vmatpush1.msra.mxu0 %v383
    %530 = vmatprep.subr.mxu0 %v386
    %531 = vmatpush1.msra.mxu0 %v385
    %532 = vmatprep.subr.mxu0 %v388
    %533 = vmatpush1.msra.mxu0 %v387
    %534 = vmatprep.subr.mxu0 %v390
    %535 = vmatpush1.msra.mxu0 %v389
    %536 = vmatprep.subr.mxu0 %v392
    %537 = vmatpush1.msra.mxu0 %v391
    %538 = vmatprep.subr.mxu0 %v394
    %539 = vmatpush1.msra.mxu0 %v393
    %540 = vmatprep.subr.mxu0 %v396
    %541 = vmatpush1.msra.mxu0 %v395
    %542 = vmatprep.subr.mxu0 %v398
    %543 = vmatpush1.msra.mxu0 %v397
    %544 = vmatprep.subr.mxu0 %v400
    %545 = vmatpush1.msra.mxu0 %v399
    %546 = vmatprep.subr.mxu0 %v402
    %547 = vmatpush1.msra.mxu0 %v401
    %548 = vmatprep.subr.mxu0 %v404
    %549 = vmatpush1.msra.mxu0 %v403
    %550 = vmatprep.subr.mxu0 %v406
    %551 = vmatpush1.msra.mxu0 %v405
    %552 = vmatprep.subr.mxu0 %v408
    %553 = vmatpush1.msra.mxu0 %v407
    %554 = vmatprep.subr.mxu0 %v410
    %555 = vmatpush1.msra.mxu0 %v409
    %556 = vmatprep.subr.mxu0 %v412
    %557 = vmatpush1.msra.mxu0 %v411
    %558 = vmatprep.mubr.f32.mxu0 %v277
    %559 = vmatmul.mubr.f32.gmra.mrb[0].mxu0 %v275
    %v560 = vpop.f32.mrb[0].mxu0
    %v561 = vadd.f32 %v484, %v560
    %v562 = vpop.f32.mrb[0].mxu0
    %v563 = vadd.f32 %v486, %v562
    %564 = vmatprep.mubr.f32.mxu0 %v283
    %565 = vmatmul.mubr.f32.gmra.mrb[0].mxu0 %v281
    %v566 = vpop.f32.mrb[0].mxu0
    %v567 = vadd.f32 %v490, %v566
    %v568 = vpop.f32.mrb[0].mxu0
    %v569 = vadd.f32 %v492, %v568
    %570 = vdwg.mxu0
    %v571 = vmax.f32 %v561, 0.0
    %v572 = vmax.f32 %v563, 0.0
    %v573 = vmax.f32 %v567, 0.0
    %v574 = vmax.f32 %v569, 0.0
    %v575 = vld [vmem:[#allocation10] sm:$0xff]
    %v576 = vld [vmem:[#allocation10 + $0x8] sm:$0xff]
    %v577 = vld [vmem:[#allocation10 + $0x10] sm:$0xff]
    %v578 = vld [vmem:[#allocation10 + $0x18] sm:$0xff]
    %v579 = vmul.f32 %v571, %v575
    %v580 = vmul.f32 %v572, %v576
    %v581 = vmul.f32 %v573, %v577
    %v582 = vmul.f32 %v574, %v578
    %v583 = vld [vmem:[#allocation11] sm:$0xff]
    %v584 = vld [vmem:[#allocation11 + $0x8] sm:$0xff]
    %v585 = vld [vmem:[#allocation11 + $0x10] sm:$0xff]
    %v586 = vld [vmem:[#allocation11 + $0x18] sm:$0xff]
    %v587 = vld [vmem:[#allocation11 + $0x20] sm:$0xff]
    %v588 = vld [vmem:[#allocation11 + $0x28] sm:$0xff]
    %v589 = vld [vmem:[#allocation11 + $0x30] sm:$0xff]
    %v590 = vld [vmem:[#allocation11 + $0x38] sm:$0xff]
    %v591 = vld [vmem:[#allocation11 + $0x40] sm:$0xff]
    %v592 = vld [vmem:[#allocation11 + $0x48] sm:$0xff]
    %v593 = vld [vmem:[#allocation11 + $0x50] sm:$0xff]
    %v594 = vld [vmem:[#allocation11 + $0x58] sm:$0xff]
    %v595 = vld [vmem:[#allocation11 + $0x60] sm:$0xff]
    %v596 = vld [vmem:[#allocation11 + $0x68] sm:$0xff]
    %v597 = vld [vmem:[#allocation11 + $0x70] sm:$0xff]
    %v598 = vld [vmem:[#allocation11 + $0x78] sm:$0xff]
    %v599 = vld [vmem:[#allocation11 + $0x80] sm:$0xff]
    %v600 = vld [vmem:[#allocation11 + $0x88] sm:$0xff]
    %v601 = vld [vmem:[#allocation11 + $0x90] sm:$0xff]
    %v602 = vld [vmem:[#allocation11 + $0x98] sm:$0xff]
    %v603 = vld [vmem:[#allocation11 + $0xa0] sm:$0xff]
    %v604 = vld [vmem:[#allocation11 + $0xa8] sm:$0xff]
    %v605 = vld [vmem:[#allocation11 + $0xb0] sm:$0xff]
    %v606 = vld [vmem:[#allocation11 + $0xb8] sm:$0xff]
    %v607 = vld [vmem:[#allocation11 + $0xc0] sm:$0xff]
    %v608 = vld [vmem:[#allocation11 + $0xc8] sm:$0xff]
    %v609 = vld [vmem:[#allocation11 + $0xd0] sm:$0xff]
    %v610 = vld [vmem:[#allocation11 + $0xd8] sm:$0xff]
    %v611 = vld [vmem:[#allocation11 + $0xe0] sm:$0xff]
    %v612 = vld [vmem:[#allocation11 + $0xe8] sm:$0xff]
    %v613 = vld [vmem:[#allocation11 + $0xf0] sm:$0xff]
    %v614 = vld [vmem:[#allocation11 + $0xf8] sm:$0xff]
    %v615 = vld [vmem:[#allocation11 + $0x100] sm:$0xff]
    %v616 = vld [vmem:[#allocation11 + $0x108] sm:$0xff]
    %v617 = vld [vmem:[#allocation11 + $0x110] sm:$0xff]
    %v618 = vld [vmem:[#allocation11 + $0x118] sm:$0xff]
    %v619 = vld [vmem:[#allocation11 + $0x120] sm:$0xff]
    %v620 = vld [vmem:[#allocation11 + $0x128] sm:$0xff]
    %v621 = vld [vmem:[#allocation11 + $0x130] sm:$0xff]
    %v622 = vld [vmem:[#allocation11 + $0x138] sm:$0xff]
    %v623 = vld [vmem:[#allocation11 + $0x140] sm:$0xff]
    %v624 = vld [vmem:[#allocation11 + $0x148] sm:$0xff]
    %v625 = vld [vmem:[#allocation11 + $0x150] sm:$0xff]
    %v626 = vld [vmem:[#allocation11 + $0x158] sm:$0xff]
    %v627 = vld [vmem:[#allocation11 + $0x160] sm:$0xff]
    %v628 = vld [vmem:[#allocation11 + $0x168] sm:$0xff]
    %v629 = vld [vmem:[#allocation11 + $0x170] sm:$0xff]
    %v630 = vld [vmem:[#allocation11 + $0x178] sm:$0xff]
    %v631 = vld [vmem:[#allocation11 + $0x180] sm:$0xff]
    %v632 = vld [vmem:[#allocation11 + $0x188] sm:$0xff]
    %v633 = vld [vmem:[#allocation11 + $0x190] sm:$0xff]
    %v634 = vld [vmem:[#allocation11 + $0x198] sm:$0xff]
    %v635 = vld [vmem:[#allocation11 + $0x1a0] sm:$0xff]
    %v636 = vld [vmem:[#allocation11 + $0x1a8] sm:$0xff]
    %v637 = vld [vmem:[#allocation11 + $0x1b0] sm:$0xff]
    %v638 = vld [vmem:[#allocation11 + $0x1b8] sm:$0xff]
    %v639 = vld [vmem:[#allocation11 + $0x1c0] sm:$0xff]
    %v640 = vld [vmem:[#allocation11 + $0x1c8] sm:$0xff]
    %v641 = vld [vmem:[#allocation11 + $0x1d0] sm:$0xff]
    %v642 = vld [vmem:[#allocation11 + $0x1d8] sm:$0xff]
    %v643 = vld [vmem:[#allocation11 + $0x1e0] sm:$0xff]
    %v644 = vld [vmem:[#allocation11 + $0x1e8] sm:$0xff]
    %v645 = vld [vmem:[#allocation11 + $0x1f0] sm:$0xff]
    %v646 = vld [vmem:[#allocation11 + $0x1f8] sm:$0xff]
    %v647 = vld [vmem:[#allocation11 + $0x200] sm:$0xff]
    %v648 = vld [vmem:[#allocation11 + $0x208] sm:$0xff]
    %v649 = vld [vmem:[#allocation11 + $0x210] sm:$0xff]
    %v650 = vld [vmem:[#allocation11 + $0x218] sm:$0xff]
    %v651 = vld [vmem:[#allocation11 + $0x220] sm:$0xff]
    %v652 = vld [vmem:[#allocation11 + $0x228] sm:$0xff]
    %v653 = vld [vmem:[#allocation11 + $0x230] sm:$0xff]
    %v654 = vld [vmem:[#allocation11 + $0x238] sm:$0xff]
    %v655 = vld [vmem:[#allocation11 + $0x240] sm:$0xff]
    %v656 = vld [vmem:[#allocation11 + $0x248] sm:$0xff]
    %v657 = vld [vmem:[#allocation11 + $0x250] sm:$0xff]
    %v658 = vld [vmem:[#allocation11 + $0x258] sm:$0xff]
    %v659 = vld [vmem:[#allocation11 + $0x260] sm:$0xff]
    %v660 = vld [vmem:[#allocation11 + $0x268] sm:$0xff]
    %v661 = vld [vmem:[#allocation11 + $0x270] sm:$0xff]
    %v662 = vld [vmem:[#allocation11 + $0x278] sm:$0xff]
    %v663 = vld [vmem:[#allocation11 + $0x280] sm:$0xff]
    %v664 = vld [vmem:[#allocation11 + $0x288] sm:$0xff]
    %v665 = vld [vmem:[#allocation11 + $0x290] sm:$0xff]
    %v666 = vld [vmem:[#allocation11 + $0x298] sm:$0xff]
    %v667 = vld [vmem:[#allocation11 + $0x2a0] sm:$0xff]
    %v668 = vld [vmem:[#allocation11 + $0x2a8] sm:$0xff]
    %v669 = vld [vmem:[#allocation11 + $0x2b0] sm:$0xff]
    %v670 = vld [vmem:[#allocation11 + $0x2b8] sm:$0xff]
    %v671 = vld [vmem:[#allocation11 + $0x2c0] sm:$0xff]
    %v672 = vld [vmem:[#allocation11 + $0x2c8] sm:$0xff]
    %v673 = vld [vmem:[#allocation11 + $0x2d0] sm:$0xff]
    %v674 = vld [vmem:[#allocation11 + $0x2d8] sm:$0xff]
    %v675 = vld [vmem:[#allocation11 + $0x2e0] sm:$0xff]
    %v676 = vld [vmem:[#allocation11 + $0x2e8] sm:$0xff]
    %v677 = vld [vmem:[#allocation11 + $0x2f0] sm:$0xff]
    %v678 = vld [vmem:[#allocation11 + $0x2f8] sm:$0xff]
    %v679 = vld [vmem:[#allocation11 + $0x300] sm:$0xff]
    %v680 = vld [vmem:[#allocation11 + $0x308] sm:$0xff]
    %v681 = vld [vmem:[#allocation11 + $0x310] sm:$0xff]
    %v682 = vld [vmem:[#allocation11 + $0x318] sm:$0xff]
    %v683 = vld [vmem:[#allocation11 + $0x320] sm:$0xff]
    %v684 = vld [vmem:[#allocation11 + $0x328] sm:$0xff]
    %v685 = vld [vmem:[#allocation11 + $0x330] sm:$0xff]
    %v686 = vld [vmem:[#allocation11 + $0x338] sm:$0xff]
    %v687 = vld [vmem:[#allocation11 + $0x340] sm:$0xff]
    %v688 = vld [vmem:[#allocation11 + $0x348] sm:$0xff]
    %v689 = vld [vmem:[#allocation11 + $0x350] sm:$0xff]
    %v690 = vld [vmem:[#allocation11 + $0x358] sm:$0xff]
    %v691 = vld [vmem:[#allocation11 + $0x360] sm:$0xff]
    %v692 = vld [vmem:[#allocation11 + $0x368] sm:$0xff]
    %v693 = vld [vmem:[#allocation11 + $0x370] sm:$0xff]
    %v694 = vld [vmem:[#allocation11 + $0x378] sm:$0xff]
    %v695 = vld [vmem:[#allocation11 + $0x380] sm:$0xff]
    %v696 = vld [vmem:[#allocation11 + $0x388] sm:$0xff]
    %v697 = vld [vmem:[#allocation11 + $0x390] sm:$0xff]
    %v698 = vld [vmem:[#allocation11 + $0x398] sm:$0xff]
    %v699 = vld [vmem:[#allocation11 + $0x3a0] sm:$0xff]
    %v700 = vld [vmem:[#allocation11 + $0x3a8] sm:$0xff]
    %v701 = vld [vmem:[#allocation11 + $0x3b0] sm:$0xff]
    %v702 = vld [vmem:[#allocation11 + $0x3b8] sm:$0xff]
    %v703 = vld [vmem:[#allocation11 + $0x3c0] sm:$0xff]
    %v704 = vld [vmem:[#allocation11 + $0x3c8] sm:$0xff]
    %v705 = vld [vmem:[#allocation11 + $0x3d0] sm:$0xff]
    %v706 = vld [vmem:[#allocation11 + $0x3d8] sm:$0xff]
    %v707 = vld [vmem:[#allocation11 + $0x3e0] sm:$0xff]
    %v708 = vld [vmem:[#allocation11 + $0x3e8] sm:$0xff]
    %v709 = vld [vmem:[#allocation11 + $0x3f0] sm:$0xff]
    %v710 = vld [vmem:[#allocation11 + $0x3f8] sm:$0xff]
    %711 = vmatprep.subr.mxu0 %v584
    %712 = vmatpush1.msra.mxu0 %v583
    %713 = vmatprep.subr.mxu0 %v588
    %714 = vmatpush1.msra.mxu0 %v587
    %715 = vmatprep.subr.mxu0 %v592
    %716 = vmatpush1.msra.mxu0 %v591
    %717 = vmatprep.subr.mxu0 %v596
    %718 = vmatpush1.msra.mxu0 %v595
    %719 = vmatprep.subr.mxu0 %v600
    %720 = vmatpush1.msra.mxu0 %v599
    %721 = vmatprep.subr.mxu0 %v604
    %722 = vmatpush1.msra.mxu0 %v603
    %723 = vmatprep.subr.mxu0 %v608
    %724 = vmatpush1.msra.mxu0 %v607
    %725 = vmatprep.subr.mxu0 %v612
    %726 = vmatpush1.msra.mxu0 %v611
    %727 = vmatprep.subr.mxu0 %v616
    %728 = vmatpush1.msra.mxu0 %v615
    %729 = vmatprep.subr.mxu0 %v620
    %730 = vmatpush1.msra.mxu0 %v619
    %731 = vmatprep.subr.mxu0 %v624
    %732 = vmatpush1.msra.mxu0 %v623
    %733 = vmatprep.subr.mxu0 %v628
    %734 = vmatpush1.msra.mxu0 %v627
    %735 = vmatprep.subr.mxu0 %v632
    %736 = vmatpush1.msra.mxu0 %v631
    %737 = vmatprep.subr.mxu0 %v636
    %738 = vmatpush1.msra.mxu0 %v635
    %739 = vmatprep.subr.mxu0 %v640
    %740 = vmatpush1.msra.mxu0 %v639
    %741 = vmatprep.subr.mxu0 %v644
    %742 = vmatpush1.msra.mxu0 %v643
    %743 = vmatprep.subr.mxu0 %v648
    %744 = vmatpush1.msra.mxu0 %v647
    %745 = vmatprep.subr.mxu0 %v652
    %746 = vmatpush1.msra.mxu0 %v651
    %747 = vmatprep.subr.mxu0 %v656
    %748 = vmatpush1.msra.mxu0 %v655
    %749 = vmatprep.subr.mxu0 %v660
    %750 = vmatpush1.msra.mxu0 %v659
    %751 = vmatprep.subr.mxu0 %v664
    %752 = vmatpush1.msra.mxu0 %v663
    %753 = vmatprep.subr.mxu0 %v668
    %754 = vmatpush1.msra.mxu0 %v667
    %755 = vmatprep.subr.mxu0 %v672
    %756 = vmatpush1.msra.mxu0 %v671
    %757 = vmatprep.subr.mxu0 %v676
    %758 = vmatpush1.msra.mxu0 %v675
    %759 = vmatprep.subr.mxu0 %v680
    %760 = vmatpush1.msra.mxu0 %v679
    %761 = vmatprep.subr.mxu0 %v684
    %762 = vmatpush1.msra.mxu0 %v683
    %763 = vmatprep.subr.mxu0 %v688
    %764 = vmatpush1.msra.mxu0 %v687
    %765 = vmatprep.subr.mxu0 %v692
    %766 = vmatpush1.msra.mxu0 %v691
    %767 = vmatprep.subr.mxu0 %v696
    %768 = vmatpush1.msra.mxu0 %v695
    %769 = vmatprep.subr.mxu0 %v700
    %770 = vmatpush1.msra.mxu0 %v699
    %771 = vmatprep.subr.mxu0 %v704
    %772 = vmatpush1.msra.mxu0 %v703
    %773 = vmatprep.subr.mxu0 %v708
    %774 = vmatpush1.msra.mxu0 %v707
    %775 = vmatprep.mubr.f32.mxu0 %v580
    %776 = vmatmul.mubr.f32.gmra.mrb[0].mxu0 %v579
    %v777 = vpop.f32.mrb[0].mxu0
    %v778 = vadd.f32 0.0, %v777
    %v779 = vpop.f32.mrb[0].mxu0
    %v780 = vadd.f32 0.0, %v779
    %781 = vmatprep.mubr.f32.mxu0 %v582
    %782 = vmatmul.mubr.f32.gmra.mrb[0].mxu0 %v581
    %v783 = vpop.f32.mrb[0].mxu0
    %v784 = vadd.f32 0.0, %v783
    %v785 = vpop.f32.mrb[0].mxu0
    %v786 = vadd.f32 0.0, %v785
    %787 = vdwg.mxu0
    %788 = vmatprep.subr.mxu0 %v586
    %789 = vmatpush1.msra.mxu0 %v585
    %790 = vmatprep.subr.mxu0 %v590
    %791 = vmatpush1.msra.mxu0 %v589
    %792 = vmatprep.subr.mxu0 %v594
    %793 = vmatpush1.msra.mxu0 %v593
    %794 = vmatprep.subr.mxu0 %v598
    %795 = vmatpush1.msra.mxu0 %v597
    %796 = vmatprep.subr.mxu0 %v602
    %797 = vmatpush1.msra.mxu0 %v601
    %798 = vmatprep.subr.mxu0 %v606
    %799 = vmatpush1.msra.mxu0 %v605
    %800 = vmatprep.subr.mxu0 %v610
    %801 = vmatpush1.msra.mxu0 %v609
    %802 = vmatprep.subr.mxu0 %v614
    %803 = vmatpush1.msra.mxu0 %v613
    %804 = vmatprep.subr.mxu0 %v618
    %805 = vmatpush1.msra.mxu0 %v617
    %806 = vmatprep.subr.mxu0 %v622
    %807 = vmatpush1.msra.mxu0 %v621
    %808 = vmatprep.subr.mxu0 %v626
    %809 = vmatpush1.msra.mxu0 %v625
    %810 = vmatprep.subr.mxu0 %v630
    %811 = vmatpush1.msra.mxu0 %v629
    %812 = vmatprep.subr.mxu0 %v634
    %813 = vmatpush1.msra.mxu0 %v633
    %814 = vmatprep.subr.mxu0 %v638
    %815 = vmatpush1.msra.mxu0 %v637
    %816 = vmatprep.subr.mxu0 %v642
    %817 = vmatpush1.msra.mxu0 %v641
    %818 = vmatprep.subr.mxu0 %v646
    %819 = vmatpush1.msra.mxu0 %v645
    %820 = vmatprep.subr.mxu0 %v650
    %821 = vmatpush1.msra.mxu0 %v649
    %822 = vmatprep.subr.mxu0 %v654
    %823 = vmatpush1.msra.mxu0 %v653
    %824 = vmatprep.subr.mxu0 %v658
    %825 = vmatpush1.msra.mxu0 %v657
    %826 = vmatprep.subr.mxu0 %v662
    %827 = vmatpush1.msra.mxu0 %v661
    %828 = vmatprep.subr.mxu0 %v666
    %829 = vmatpush1.msra.mxu0 %v665
    %830 = vmatprep.subr.mxu0 %v670
    %831 = vmatpush1.msra.mxu0 %v669
    %832 = vmatprep.subr.mxu0 %v674
    %833 = vmatpush1.msra.mxu0 %v673
    %834 = vmatprep.subr.mxu0 %v678
    %835 = vmatpush1.msra.mxu0 %v677
    %836 = vmatprep.subr.mxu0 %v682
    %837 = vmatpush1.msra.mxu0 %v681
    %838 = vmatprep.subr.mxu0 %v686
    %839 = vmatpush1.msra.mxu0 %v685
    %840 = vmatprep.subr.mxu0 %v690
    %841 = vmatpush1.msra.mxu0 %v689
    %842 = vmatprep.subr.mxu0 %v694
    %843 = vmatpush1.msra.mxu0 %v693
    %844 = vmatprep.subr.mxu0 %v698
    %845 = vmatpush1.msra.mxu0 %v697
    %846 = vmatprep.subr.mxu0 %v702
    %847 = vmatpush1.msra.mxu0 %v701
    %848 = vmatprep.subr.mxu0 %v706
    %849 = vmatpush1.msra.mxu0 %v705
    %850 = vmatprep.subr.mxu0 %v710
    %851 = vmatpush1.msra.mxu0 %v709
    %852 = vmatprep.mubr.f32.mxu0 %v580
    %853 = vmatmul.mubr.f32.gmra.mrb[0].mxu0 %v579
    %v854 = vpop.f32.mrb[0].mxu0
    %v855 = vadd.f32 0.0, %v854
    %v856 = vpop.f32.mrb[0].mxu0
    %v857 = vadd.f32 0.0, %v856
    %858 = vmatprep.mubr.f32.mxu0 %v582
    %859 = vmatmul.mubr.f32.gmra.mrb[0].mxu0 %v581
    %v860 = vpop.f32.mrb[0].mxu0
    %v861 = vadd.f32 0.0, %v860
    %v862 = vpop.f32.mrb[0].mxu0
    %v863 = vadd.f32 0.0, %v862
    %864 = vdwg.mxu0
    %865 = vst [vmem:[#allocation13 + $0x40] sm:$0xff] %v778
    %866 = vst [vmem:[#allocation13 + $0x48] sm:$0xff] %v780
    %867 = vst [vmem:[#allocation13 + $0x50] sm:$0xff] %v855
    %868 = vst [vmem:[#allocation13 + $0x58] sm:$0xff] %v857
    %869 = vst [vmem:[#allocation13 + $0x60] sm:$0xff] %v784
    %870 = vst [vmem:[#allocation13 + $0x68] sm:$0xff] %v786
    %871 = vst [vmem:[#allocation13 + $0x70] sm:$0xff] %v861
    %872 = vst [vmem:[#allocation13 + $0x78] sm:$0xff] %v863
    // Predicated region
    $region50: #{tpu_custom_call.1} parent=1 // pred_check
      _
    $region51: #{tpu_custom_call.1} parent=1 // pred_check_branch
      %874 = sbr.rel (0) target = $region53
    $region52: #{tpu_custom_call.1} parent=1 // pred_region
      %s876 = ssub.s32 2048, 2048
      %877 = vsyncadd [#allocation4], %s876
      %s878 = sshll.u32 [#allocation13], 4
      %s879 = int_to_ptr.vmem [resolvable:$true] %s878
      %884 = dma.vmem_to_hbm [thread:$0]  %s879, 2048, %s6, [#allocation4], 512, 512, 32
    $region53: #{tpu_custom_call.1} parent=1 // pred_fallthru
      _
    // Predicated region
    $region54: #{tpu_custom_call.1} parent=1 // pred_check
      _
    $region55: #{tpu_custom_call.1} parent=1 // pred_check_branch
      %886 = sbr.rel (0) target = $region57
    $region56: #{tpu_custom_call.1} parent=1 // pred_region
      %887 = dma.done [#allocation4], 2048
    $region57: #{tpu_custom_call.1} parent=1 // pred_fallthru
      _
    %888 = vsyncpa [#allocation3], 1
    %889 = vsyncpa [#allocation6], 1
    %890 = vsyncpa [#allocation9], 1
    %891 = vsyncpa [#allocation12], 1
    %892 = vsyncpa [#allocation4], 1

</llo_original>
